<compile_context>
chip_gen: v6e
topology: v6e:2x2x1
jax: 0.10.0
libtpu: 0.0.40
codegen_flags: <defaults>
</compile_context>

<pallas_src>
import functools

import jax
import jax.numpy as jnp
from jax.experimental import pallas as pl
from jax.experimental.pallas import tpu as pltpu

TM_MATMUL = 512      # max row tile for the fused conv-matmul kernel
TM_ELEM = 1024       # row tile for the HBM-bound elementwise (BN affine) kernel


def _round_up(x, m):
    return -(-x // m) * m


def _vmem_budget():
    """Generation-aware scoped-VMEM budget: 64 MiB on v5e/v6e (128 MiB physical),
    48 MiB on v7x (64 MiB physical) or when the query is unavailable."""
    try:
        get_info = getattr(pltpu, "get_tpu_info", None)
        if get_info is not None:
            cap = int(get_info().vmem_capacity_bytes)
            if cap >= 100 * (1 << 20):
                return 64 * (1 << 20)
    except Exception:
        pass
    return 48 * (1 << 20)


VMEM_LIMIT = _vmem_budget()


def _pick_tm(m, k, n, n_outs):
    """Largest row tile (multiple of 8, <= TM_MATMUL) whose double-buffered
    footprint (A tile + resident weight + outputs + f32 temp) fits the budget."""
    tm = min(TM_MATMUL, _round_up(m, 8))
    budget = VMEM_LIMIT - (2 << 20)            # headroom
    while tm > 8:
        need = (2 * tm * k * 2                 # A tile (bf16, double buffered)
                + 2 * k * n * 2                # weight (bf16, resident; budget 2 bufs)
                + 2 * n_outs * tm * n * 4      # outputs (worst-case f32, double buffered)
                + tm * n * 4)                  # f32 pre-activation temp
        if need <= budget:
            break
        tm = _round_up(tm // 2, 8)
    return tm


# ---------------------------------------------------------------------------
# Pallas kernels
# ---------------------------------------------------------------------------
def _conv_matmul_kernel(a_ref, b_ref, bias_ref, *out_refs, act, mode):
    """z = A @ B + bias (bf16 MXU operands, f32 accumulate), then activation.
    mode='stats': also write per-tile [sum; sumsq] of pre-activation.
    mode='dual' : also write sigmoid(z) to a second output.
    Whole-K block: no reduction grid axis, weight stays VMEM-resident."""
    z = jnp.dot(a_ref[...], b_ref[...],
                preferred_element_type=jnp.float32) + bias_ref[...]

    if mode == "stats":
        s = jnp.sum(z, axis=0, keepdims=True)
        sq = jnp.sum(z * z, axis=0, keepdims=True)
        out_refs[1][...] = jnp.concatenate([s, sq], axis=0)[None]

    out_ref = out_refs[0]
    if act == "relu":
        out_ref[...] = jnp.maximum(z, 0.0).astype(out_ref.dtype)
    elif act == "sigmoid":
        out_ref[...] = jax.nn.sigmoid(z).astype(out_ref.dtype)
    else:
        out_ref[...] = z.astype(out_ref.dtype)

    if mode == "dual":
        out_refs[1][...] = jax.nn.sigmoid(z).astype(out_refs[1].dtype)


def matmul_bias_act(a, b, bias, act="none", mode="plain", out_dtype=jnp.bfloat16):
    """act(A @ B + bias).  A:(M,K), B:(K,N), bias:(N,).
    mode='plain' -> (M,N) out_dtype
    mode='stats' -> ((M,N) out_dtype, (2,N) f32 per-channel [sum; sumsq] of pre-act)
    mode='dual'  -> ((M,N) f32 logits, (M,N) f32 sigmoid)
    """
    M, K = a.shape
    K2, N = b.shape
    assert K == K2
    a = a.astype(jnp.bfloat16)
    b = b.astype(jnp.bfloat16)
    bias_f = bias.astype(jnp.float32).reshape(1, N)

    n_outs = 2 if mode in ("stats", "dual") else 1
    tm = _pick_tm(M, K, N, n_outs)
    m_pad = _round_up(M, tm)
    if m_pad != M:
        a = jnp.pad(a, ((0, m_pad - M), (0, 0)))
    n_tiles = m_pad // tm

    if mode == "dual":
        out_dtype = jnp.float32

    out_shapes = [jax.ShapeDtypeStruct((m_pad, N), out_dtype)]
    out_specs = [pl.BlockSpec((tm, N), lambda i: (i, 0))]
    if mode == "stats":
        out_shapes.append(jax.ShapeDtypeStruct((n_tiles, 2, N), jnp.float32))
        out_specs.append(pl.BlockSpec((1, 2, N), lambda i: (i, 0, 0)))
    elif mode == "dual":
        out_shapes.append(jax.ShapeDtypeStruct((m_pad, N), jnp.float32))
        out_specs.append(pl.BlockSpec((tm, N), lambda i: (i, 0)))
    multi = mode in ("stats", "dual")

    results = pl.pallas_call(
        functools.partial(_conv_matmul_kernel, act=act, mode=mode),
        out_shape=tuple(out_shapes) if multi else out_shapes[0],
        grid=(n_tiles,),
        in_specs=[
            pl.BlockSpec((tm, K), lambda i: (i, 0)),   # patches: streamed per row tile
            pl.BlockSpec((K, N), lambda i: (0, 0)),    # weight: whole-K, VMEM-resident
            pl.BlockSpec((1, N), lambda i: (0, 0)),    # bias
        ],
        out_specs=tuple(out_specs) if multi else out_specs[0],
        compiler_params=pltpu.CompilerParams(
            dimension_semantics=("parallel",),
            vmem_limit_bytes=VMEM_LIMIT,
        ),
    )(a, b, bias_f)

    n_pad_rows = m_pad - M
    if mode == "plain":
        out = results
        return out[:M] if n_pad_rows else out
    if mode == "dual":
        out, sig = results
        if n_pad_rows:
            out, sig = out[:M], sig[:M]
        return out, sig
    # stats mode: reduce per-tile partials, correct for zero-padded rows
    out, partial = results
    stats = jnp.sum(partial, axis=0)                       # (2, N) f32
    if n_pad_rows:
        out = out[:M]
        bias_v = bias.astype(jnp.float32)
        # padded A rows are exact zeros -> their pre-activation is exactly `bias`
        corr = jnp.stack([bias_v * n_pad_rows,
                          (bias_v * bias_v) * n_pad_rows], axis=0)
        stats = stats - corr
    return out, stats


def _affine_act_kernel(x_ref, scale_ref, shift_ref, o_ref, *, act):
    v = x_ref[...].astype(jnp.float32) * scale_ref[...] + shift_ref[...]
    if act == "relu":
        v = jnp.maximum(v, 0.0)
    elif act == "sigmoid":
        v = jax.nn.sigmoid(v)
    o_ref[...] = v.astype(o_ref.dtype)


def affine_act(x, scale, shift, act="none", out_dtype=jnp.bfloat16):
    """out = act(x * scale + shift), per-channel scale/shift.  x:(M,N)."""
    M, N = x.shape
    tm = min(TM_ELEM, _round_up(M, 8))
    m_pad = _round_up(M, tm)
    x_p = jnp.pad(x, ((0, m_pad - M), (0, 0))) if m_pad != M else x
    out = pl.pallas_call(
        functools.partial(_affine_act_kernel, act=act),
        out_shape=jax.ShapeDtypeStruct((m_pad, N), out_dtype),
        grid=(m_pad // tm,),
        in_specs=[
            pl.BlockSpec((tm, N), lambda i: (i, 0)),
            pl.BlockSpec((1, N), lambda i: (0, 0)),
            pl.BlockSpec((1, N), lambda i: (0, 0)),
        ],
        out_specs=pl.BlockSpec((tm, N), lambda i: (i, 0)),
        compiler_params=pltpu.CompilerParams(
            dimension_semantics=("parallel",),
            vmem_limit_bytes=VMEM_LIMIT,
        ),
    )(x_p, scale.reshape(1, N).astype(jnp.float32),
       shift.reshape(1, N).astype(jnp.float32))
    return out[:M] if m_pad != M else out


# ---------------------------------------------------------------------------
# Glue: im2col, conv, batchnorm
# ---------------------------------------------------------------------------
def _im2col(x, ksize, stride, pad):
    """x: NHWC -> patches (N*Ho*Wo, ksize*ksize*C) ordered (kh, kw, c)."""
    n, h, w, c = x.shape
    xp = jnp.pad(x, ((0, 0), (pad, pad), (pad, pad), (0, 0)))
    ho = (h + 2 * pad - ksize) // stride + 1
    wo = (w + 2 * pad - ksize) // stride + 1
    cols = []
    for kh in range(ksize):
        for kw in range(ksize):
            cols.append(
                xp[:, kh: kh + stride * (ho - 1) + 1: stride,
                       kw: kw + stride * (wo - 1) + 1: stride, :])
    patches = jnp.stack(cols, axis=3)                 # (N, Ho, Wo, k*k, C)
    patches = patches.reshape(n * ho * wo, ksize * ksize * c)
    return patches, (n, ho, wo)


def conv2d(x, wmat, bias, stride, pad, ksize=4, act="none", mode="plain"):
    """x: NHWC bf16; wmat: (k*k*cin, cout) bf16; returns NHWC (+ extras)."""
    cout = wmat.shape[1]
    patches, (n, ho, wo) = _im2col(x, ksize, stride, pad)
    res = matmul_bias_act(patches, wmat, bias, act=act, mode=mode)
    if mode == "plain":
        return res.reshape(n, ho, wo, cout)
    if mode == "dual":
        out, sig = res
        return out.reshape(n, ho, wo, cout), sig.reshape(n, ho, wo, cout)
    out, stats = res
    return out.reshape(n, ho, wo, cout), stats


def batchnorm_relu_from_stats(y, stats, gamma, beta, eps=1e-5):
    """Training-mode BatchNorm2d (biased variance over N,H,W) + ReLU.
    y: NHWC conv output (bf16); stats: (2, C) f32 fused [sum; sumsq]."""
    n, h, w, c = y.shape
    count = float(n * h * w)
    mean = stats[0] / count
    var = jnp.maximum(stats[1] / count - mean * mean, 0.0)
    scale = gamma / jnp.sqrt(var + eps)
    shift = beta - mean * scale
    out = affine_act(y.reshape(n * h * w, c), scale, shift, act="relu")
    return out.reshape(n, h, w, c)


# ---------------------------------------------------------------------------
# Discriminator
# ---------------------------------------------------------------------------
def init_discriminator_params(key, image_dim=6, ch=64):
    ks = jax.random.split(key, 5)

    def conv_p(k, cout, cin, pad_cout=None):
        kw_, kb_ = jax.random.split(k)
        w = 0.05 * jax.random.normal(kw_, (cout, cin, 4, 4), jnp.float32)
        b = 0.01 * jax.random.normal(kb_, (cout,), jnp.float32)
        # Precompute OIHW -> (kh,kw,cin,cout) -> (k*k*cin, cout) once, store bf16.
        wmat = jnp.transpose(w, (2, 3, 1, 0)).reshape(4 * 4 * cin, cout)
        if pad_cout is not None and pad_cout > cout:
            wmat = jnp.pad(wmat, ((0, 0), (0, pad_cout - cout)))
            b = jnp.pad(b, (0, pad_cout - cout))
        return wmat.astype(jnp.bfloat16), b.astype(jnp.float32)

    p = {}
    p["wm1"], p["b1"] = conv_p(ks[0], ch, image_dim)
    p["wm2"], p["b2"] = conv_p(ks[1], ch * 2, ch)
    p["wm3"], p["b3"] = conv_p(ks[2], ch * 4, ch * 2)
    p["wm4"], p["b4"] = conv_p(ks[3], ch * 8, ch * 4)
    # conv5: cout 1 -> pad to 128 so the matmul output block is lane-dense.
    p["wm5"], p["b5"] = conv_p(ks[4], 1, ch * 8, pad_cout=128)
    # BatchNorm affine params (PyTorch default init: weight=1, bias=0)
    p["g1"], p["be1"] = jnp.ones((ch * 2,), jnp.float32), jnp.zeros((ch * 2,), jnp.float32)
    p["g2"], p["be2"] = jnp.ones((ch * 4,), jnp.float32), jnp.zeros((ch * 4,), jnp.float32)
    p["g3"], p["be3"] = jnp.ones((ch * 8,), jnp.float32), jnp.zeros((ch * 8,), jnp.float32)
    return p


def discriminator_forward(params, x, y, return_features=False):
    """x, y: NCHW float32. Returns (sigmoid(output_5) in NCHW f32, features)."""
    inp = jnp.concatenate([x, y], axis=1)                  # cat on channel dim (NCHW)
    h = jnp.transpose(inp, (0, 2, 3, 1)).astype(jnp.bfloat16)   # -> NHWC bf16

    o1 = conv2d(h, params["wm1"], params["b1"], 2, 1, act="relu")
    c2, st2 = conv2d(o1, params["wm2"], params["b2"], 2, 1, mode="stats")
    o2 = batchnorm_relu_from_stats(c2, st2, params["g1"], params["be1"])
    c3, st3 = conv2d(o2, params["wm3"], params["b3"], 2, 1, mode="stats")
    o3 = batchnorm_relu_from_stats(c3, st3, params["g2"], params["be2"])
    c4, st4 = conv2d(o3, params["wm4"], params["b4"], 1, 1, mode="stats")
    o4 = batchnorm_relu_from_stats(c4, st4, params["g3"], params["be3"])

    # conv5: logits + sigmoid fused in one kernel; slice the lane-padded cout.
    logits_p, sig_p = conv2d(o4, params["wm5"], params["b5"], 1, 1, mode="dual")
    o5 = logits_p[..., :1]
    sig = sig_p[..., :1]

    to_nchw = lambda t: jnp.transpose(t, (0, 3, 1, 2)).astype(jnp.float32)
    features = None
    if return_features:
        features = [to_nchw(o1), to_nchw(o2), to_nchw(o3), to_nchw(o4), to_nchw(o5)]
    return to_nchw(sig), features


if __name__ == "__main__":
    key = jax.random.PRNGKey(0)
    k_params, k_x, k_y = jax.random.split(key, 3)

    # Small shapes consistent with the module: image_dim = 3 + 3 = 6, ch = 8,
    # spatial 32x32 so every 4x4 conv stays valid (32->16->8->4->3->2).
    ch = 8
    x = jax.random.normal(k_x, (2, 3, 32, 32), jnp.float32)
    y = jax.random.normal(k_y, (2, 3, 32, 32), jnp.float32)
    params = init_discriminator_params(k_params, image_dim=6, ch=ch)

    out, feats = discriminator_forward(params, x, y, return_features=True)
    out = jax.block_until_ready(out)

    assert out.shape == (2, 1, 2, 2), out.shape
    assert bool(jnp.all(jnp.isfinite(out)))
    assert bool(jnp.all((out >= 0.0) & (out <= 1.0)))
    assert feats[0].shape == (2, ch, 16, 16)
    assert feats[3].shape == (2, ch * 8, 3, 3)
    print("KERNEL_OK")
</pallas_src>

<mosaic_0001>
module attributes {stable_mosaic.version = 11 : i64} {
  func.func @_conv_matmul_kernel(%arg0: i32, %arg1: memref<512x96xbf16, #tpu.memory_space<vmem>>, %arg2: memref<96x8xbf16, #tpu.memory_space<vmem>>, %arg3: memref<1x8xf32, #tpu.memory_space<vmem>>, %arg4: memref<512x8xbf16, #tpu.memory_space<vmem>>) attributes {dimension_semantics = [#tpu.dimension_semantics<parallel>], iteration_bounds = array<i64: 1>, scalar_prefetch = 0 : i64, scratch_operands = 0 : i64, tpu.core_type = #tpu.core_type<tc>, window_params = [{transform_indices = @transform_0, window_bounds = array<i64: 512, 96>}, {pipeline_mode = #tpu.pipeline_mode<synchronous>, transform_indices = @transform_1, window_bounds = array<i64: 96, 8>}, {pipeline_mode = #tpu.pipeline_mode<synchronous>, transform_indices = @transform_2, window_bounds = array<i64: 1, 8>}, {transform_indices = @transform_3, window_bounds = array<i64: 512, 8>}]} {
    %c0 = arith.constant 0 : index
    %c0_0 = arith.constant 0 : index
    %0 = vector.load %arg1[%c0, %c0_0] : memref<512x96xbf16, #tpu.memory_space<vmem>>, vector<512x96xbf16>
    %c0_1 = arith.constant 0 : index
    %c0_2 = arith.constant 0 : index
    %1 = vector.load %arg2[%c0_1, %c0_2] : memref<96x8xbf16, #tpu.memory_space<vmem>>, vector<96x8xbf16>
    %cst = arith.constant dense<0.000000e+00> : vector<512x8xf32>
    %2 = tpu.matmul %0, %1, %cst {dimension_numbers = #tpu.dot_dimension_numbers<[1], [0], [0], [1], [0, 0, 1, 1], [], []>} : vector<512x96xbf16>, vector<96x8xbf16>, vector<512x8xf32> -> vector<512x8xf32>
    %c0_3 = arith.constant 0 : index
    %c0_4 = arith.constant 0 : index
    %3 = vector.load %arg3[%c0_3, %c0_4] : memref<1x8xf32, #tpu.memory_space<vmem>>, vector<1x8xf32>
    %4 = vector.broadcast %3 : vector<1x8xf32> to vector<512x8xf32>
    %5 = arith.addf %2, %4 : vector<512x8xf32>
    %cst_5 = arith.constant 0.000000e+00 : f32
    %6 = vector.broadcast %cst_5 : f32 to vector<512x8xf32>
    %7 = arith.maximumf %5, %6 : vector<512x8xf32>
    %8 = arith.truncf %7 : vector<512x8xf32> to vector<512x8xbf16>
    %c0_6 = arith.constant 0 : index
    %c0_7 = arith.constant 0 : index
    %9 = vector.load %arg4[%c0_6, %c0_7] : memref<512x8xbf16, #tpu.memory_space<vmem>>, vector<512x8xbf16>
    tpu.vector_store %arg4[%c0_6, %c0_7], %8 {strides = array<i32>} : memref<512x8xbf16, #tpu.memory_space<vmem>>, vector<512x8xbf16>,
    return
  }
  func.func @transform_0(%arg0: i32) -> (i32, i32) {
    %c0_i32 = arith.constant 0 : i32
    %c0_i32_0 = arith.constant 0 : i32
    return %arg0, %c0_i32 : i32, i32
  }
  func.func @transform_1(%arg0: i32) -> (i32, i32) {
    %c0_i32 = arith.constant 0 : i32
    %c0_i32_0 = arith.constant 0 : i32
    %c0_i32_1 = arith.constant 0 : i32
    return %c0_i32, %c0_i32_0 : i32, i32
  }
  func.func @transform_2(%arg0: i32) -> (i32, i32) {
    %c0_i32 = arith.constant 0 : i32
    %c0_i32_0 = arith.constant 0 : i32
    %c0_i32_1 = arith.constant 0 : i32
    return %c0_i32, %c0_i32_0 : i32, i32
  }
  func.func @transform_3(%arg0: i32) -> (i32, i32) {
    %c0_i32 = arith.constant 0 : i32
    %c0_i32_0 = arith.constant 0 : i32
    return %arg0, %c0_i32 : i32, i32
  }
}

</mosaic_0001>

<llo_original>
// kernel: tpu_custom_call.1
$region0: #{tpu_custom_call.1}
  #allocation0 [shape = 'u32[]', space=smem, size = 0x4, offset = 0x4, fixed_abs, tag = 'smem constant byte address 0x4 - core index']
  #allocation1 [shape = 'u32[144,128]{1,0:T(1,128)}', space=vmem, size = 0x12000, scoped, tag = 'internal scratch']
  %s0 = inlined_call_operand.vmem [shape: bf16[512,96], index: 0, kind: input, shape index: {}]
  %s1 = inlined_call_operand.vmem [shape: bf16[96,8], index: 1, kind: input, shape index: {}]
  %s2 = inlined_call_operand.vmem [shape: f32[1,8], index: 2, kind: input, shape index: {}]
  %s3 = inlined_call_operand.vmem [shape: bf16[512,8], index: 3, kind: output, shape index: {}]
  %s4 = sld [smem:[#allocation0]]
  $region22: #{tpu_custom_call.1} parent=0
    _
  %s6 = ssub.s32 1, %s4
  %s7 = scalar_select 0, %s6, %s4
  // Predicated region
  $region2: #{tpu_custom_call.1} parent=0 // pred_check
    _
  $region3: #{tpu_custom_call.1} parent=0 // pred_check_branch
    %9 = sbr.rel (0) target = $region5
  $region4: #{tpu_custom_call.1} parent=0 // pred_region
    _
  $region5: #{tpu_custom_call.1} parent=0 // pred_fallthru
    _
  // Predicated region
  $region6: #{tpu_custom_call.1} parent=0 // pred_check
    _
  $region7: #{tpu_custom_call.1} parent=0 // pred_check_branch
    %11 = sbr.rel (0) target = $region9
  $region8: #{tpu_custom_call.1} parent=0 // pred_region
    _
  $region9: #{tpu_custom_call.1} parent=0 // pred_fallthru
    _
  // Predicated region
  $region10: #{tpu_custom_call.1} parent=0 // pred_check
    _
  $region11: #{tpu_custom_call.1} parent=0 // pred_check_branch
    %13 = sbr.rel (0) target = $region13
  $region12: #{tpu_custom_call.1} parent=0 // pred_region
    _
  $region13: #{tpu_custom_call.1} parent=0 // pred_fallthru
    _
  %v15 = vld [vmem:[%s0] sm:$0xf]
  %v16 = vld [vmem:[%s0 + $0x4] sm:$0xf]
  %v17 = vld [vmem:[%s0 + $0x8] sm:$0xf]
  %v18 = vld [vmem:[%s0 + $0xc] sm:$0xf]
  %v19 = vld [vmem:[%s0 + $0x10] sm:$0xf]
  %v20 = vld [vmem:[%s0 + $0x14] sm:$0xf]
  %v21 = vld [vmem:[%s0 + $0x18] sm:$0xf]
  %v22 = vld [vmem:[%s0 + $0x1c] sm:$0xf]
  %v23 = vld [vmem:[%s0 + $0x20] sm:$0xf]
  %v24 = vld [vmem:[%s0 + $0x24] sm:$0xf]
  %v25 = vld [vmem:[%s0 + $0x28] sm:$0xf]
  %v26 = vld [vmem:[%s0 + $0x2c] sm:$0xf]
  %v27 = vld [vmem:[%s0 + $0x30] sm:$0xf]
  %v28 = vld [vmem:[%s0 + $0x34] sm:$0xf]
  %v29 = vld [vmem:[%s0 + $0x38] sm:$0xf]
  %v30 = vld [vmem:[%s0 + $0x3c] sm:$0xf]
  %v31 = vld [vmem:[%s0 + $0x40] sm:$0xf]
  %v32 = vld [vmem:[%s0 + $0x44] sm:$0xf]
  %v33 = vld [vmem:[%s0 + $0x48] sm:$0xf]
  %v34 = vld [vmem:[%s0 + $0x4c] sm:$0xf]
  %v35 = vld [vmem:[%s0 + $0x50] sm:$0xf]
  %v36 = vld [vmem:[%s0 + $0x54] sm:$0xf]
  %v37 = vld [vmem:[%s0 + $0x58] sm:$0xf]
  %v38 = vld [vmem:[%s0 + $0x5c] sm:$0xf]
  %v39 = vld [vmem:[%s0 + $0x60] sm:$0xf]
  %v40 = vld [vmem:[%s0 + $0x64] sm:$0xf]
  %v41 = vld [vmem:[%s0 + $0x68] sm:$0xf]
  %v42 = vld [vmem:[%s0 + $0x6c] sm:$0xf]
  %v43 = vld [vmem:[%s0 + $0x70] sm:$0xf]
  %v44 = vld [vmem:[%s0 + $0x74] sm:$0xf]
  %v45 = vld [vmem:[%s0 + $0x78] sm:$0xf]
  %v46 = vld [vmem:[%s0 + $0x7c] sm:$0xf]
  %v47 = vld [vmem:[%s0 + $0x80] sm:$0xf]
  %v48 = vld [vmem:[%s0 + $0x84] sm:$0xf]
  %v49 = vld [vmem:[%s0 + $0x88] sm:$0xf]
  %v50 = vld [vmem:[%s0 + $0x8c] sm:$0xf]
  %v51 = vld [vmem:[%s0 + $0x90] sm:$0xf]
  %v52 = vld [vmem:[%s0 + $0x94] sm:$0xf]
  %v53 = vld [vmem:[%s0 + $0x98] sm:$0xf]
  %v54 = vld [vmem:[%s0 + $0x9c] sm:$0xf]
  %v55 = vld [vmem:[%s0 + $0xa0] sm:$0xf]
  %v56 = vld [vmem:[%s0 + $0xa4] sm:$0xf]
  %v57 = vld [vmem:[%s0 + $0xa8] sm:$0xf]
  %v58 = vld [vmem:[%s0 + $0xac] sm:$0xf]
  %v59 = vld [vmem:[%s0 + $0xb0] sm:$0xf]
  %v60 = vld [vmem:[%s0 + $0xb4] sm:$0xf]
  %v61 = vld [vmem:[%s0 + $0xb8] sm:$0xf]
  %v62 = vld [vmem:[%s0 + $0xbc] sm:$0xf]
  %v63 = vld [vmem:[%s0 + $0xc0] sm:$0xf]
  %v64 = vld [vmem:[%s0 + $0xc4] sm:$0xf]
  %v65 = vld [vmem:[%s0 + $0xc8] sm:$0xf]
  %v66 = vld [vmem:[%s0 + $0xcc] sm:$0xf]
  %v67 = vld [vmem:[%s0 + $0xd0] sm:$0xf]
  %v68 = vld [vmem:[%s0 + $0xd4] sm:$0xf]
  %v69 = vld [vmem:[%s0 + $0xd8] sm:$0xf]
  %v70 = vld [vmem:[%s0 + $0xdc] sm:$0xf]
  %v71 = vld [vmem:[%s0 + $0xe0] sm:$0xf]
  %v72 = vld [vmem:[%s0 + $0xe4] sm:$0xf]
  %v73 = vld [vmem:[%s0 + $0xe8] sm:$0xf]
  %v74 = vld [vmem:[%s0 + $0xec] sm:$0xf]
  %v75 = vld [vmem:[%s0 + $0xf0] sm:$0xf]
  %v76 = vld [vmem:[%s0 + $0xf4] sm:$0xf]
  %v77 = vld [vmem:[%s0 + $0xf8] sm:$0xf]
  %v78 = vld [vmem:[%s0 + $0xfc] sm:$0xf]
  %v79 = vld [vmem:[%s1] sm:$0xf]
  %v80 = vld [vmem:[%s1 + $0x4] sm:$0xf]
  %v81 = vld [vmem:[%s1 + $0x8] sm:$0xf]
  %v82 = vld [vmem:[%s1 + $0xc] sm:$0xf]
  %v83 = vld [vmem:[%s1 + $0x10] sm:$0xf]
  %v84 = vld [vmem:[%s1 + $0x14] sm:$0xf]
  %v85 = vld [vmem:[%s1 + $0x18] sm:$0xf]
  %v86 = vld [vmem:[%s1 + $0x1c] sm:$0xf]
  %v87 = vld [vmem:[%s1 + $0x20] sm:$0xf]
  %v88 = vld [vmem:[%s1 + $0x24] sm:$0xf]
  %v89 = vld [vmem:[%s1 + $0x28] sm:$0xf]
  %v90 = vld [vmem:[%s1 + $0x2c] sm:$0xf]
  %v91 = vld [vmem:[%s2] sm:$0x1]
  %v93 = vlaneseq
  %v94 = vshrl.u32 %v93, 7
  %v95 = vsub.s32 0, %v94
  %v96 = vrot.slane %v91, %v95
  %v162 = vunpack.c.l.b16 %v15
  %v163 = vunpack.c.l.b16 %v16
  %v164 = vunpack.c.l.b16 %v17
  %v165 = vunpack.c.l.b16 %v18
  %v166 = vunpack.c.l.b16 %v19
  %v167 = vunpack.c.l.b16 %v20
  %v168 = vunpack.c.l.b16 %v21
  %v169 = vunpack.c.l.b16 %v22
  %v170 = vunpack.c.l.b16 %v23
  %v171 = vunpack.c.l.b16 %v24
  %v172 = vunpack.c.l.b16 %v25
  %v173 = vunpack.c.l.b16 %v26
  %v174 = vunpack.c.l.b16 %v27
  %v175 = vunpack.c.l.b16 %v28
  %v176 = vunpack.c.l.b16 %v29
  %v177 = vunpack.c.l.b16 %v30
  %v178 = vunpack.c.l.b16 %v31
  %v179 = vunpack.c.l.b16 %v32
  %v180 = vunpack.c.l.b16 %v33
  %v181 = vunpack.c.l.b16 %v34
  %v182 = vunpack.c.l.b16 %v35
  %v183 = vunpack.c.l.b16 %v36
  %v184 = vunpack.c.l.b16 %v37
  %v185 = vunpack.c.l.b16 %v38
  %v186 = vunpack.c.l.b16 %v39
  %v187 = vunpack.c.l.b16 %v40
  %v188 = vunpack.c.l.b16 %v41
  %v189 = vunpack.c.l.b16 %v42
  %v190 = vunpack.c.l.b16 %v43
  %v191 = vunpack.c.l.b16 %v44
  %v192 = vunpack.c.l.b16 %v45
  %v193 = vunpack.c.l.b16 %v46
  %v194 = vunpack.c.l.b16 %v47
  %v195 = vunpack.c.l.b16 %v48
  %v196 = vunpack.c.l.b16 %v49
  %v197 = vunpack.c.l.b16 %v50
  %v198 = vunpack.c.l.b16 %v51
  %v199 = vunpack.c.l.b16 %v52
  %v200 = vunpack.c.l.b16 %v53
  %v201 = vunpack.c.l.b16 %v54
  %v202 = vunpack.c.l.b16 %v55
  %v203 = vunpack.c.l.b16 %v56
  %v204 = vunpack.c.l.b16 %v57
  %v205 = vunpack.c.l.b16 %v58
  %v206 = vunpack.c.l.b16 %v59
  %v207 = vunpack.c.l.b16 %v60
  %v208 = vunpack.c.l.b16 %v61
  %v209 = vunpack.c.l.b16 %v62
  %v210 = vunpack.c.l.b16 %v63
  %v211 = vunpack.c.l.b16 %v64
  %v212 = vunpack.c.l.b16 %v65
  %v213 = vunpack.c.l.b16 %v66
  %v214 = vunpack.c.l.b16 %v67
  %v215 = vunpack.c.l.b16 %v68
  %v216 = vunpack.c.l.b16 %v69
  %v217 = vunpack.c.l.b16 %v70
  %v218 = vunpack.c.l.b16 %v71
  %v219 = vunpack.c.l.b16 %v72
  %v220 = vunpack.c.l.b16 %v73
  %v221 = vunpack.c.l.b16 %v74
  %v222 = vunpack.c.l.b16 %v75
  %v223 = vunpack.c.l.b16 %v76
  %v224 = vunpack.c.l.b16 %v77
  %v225 = vunpack.c.l.b16 %v78
  %v226 = vpack.c.b16 %v163, %v162
  %v227 = vpack.c.b16 %v165, %v164
  %v228 = vpack.c.b16 %v167, %v166
  %v229 = vpack.c.b16 %v169, %v168
  %v230 = vpack.c.b16 %v171, %v170
  %v231 = vpack.c.b16 %v173, %v172
  %v232 = vpack.c.b16 %v175, %v174
  %v233 = vpack.c.b16 %v177, %v176
  %v234 = vpack.c.b16 %v179, %v178
  %v235 = vpack.c.b16 %v181, %v180
  %v236 = vpack.c.b16 %v183, %v182
  %v237 = vpack.c.b16 %v185, %v184
  %v238 = vpack.c.b16 %v187, %v186
  %v239 = vpack.c.b16 %v189, %v188
  %v240 = vpack.c.b16 %v191, %v190
  %v241 = vpack.c.b16 %v193, %v192
  %v242 = vpack.c.b16 %v195, %v194
  %v243 = vpack.c.b16 %v197, %v196
  %v244 = vpack.c.b16 %v199, %v198
  %v245 = vpack.c.b16 %v201, %v200
  %v246 = vpack.c.b16 %v203, %v202
  %v247 = vpack.c.b16 %v205, %v204
  %v248 = vpack.c.b16 %v207, %v206
  %v249 = vpack.c.b16 %v209, %v208
  %v250 = vpack.c.b16 %v211, %v210
  %v251 = vpack.c.b16 %v213, %v212
  %v252 = vpack.c.b16 %v215, %v214
  %v253 = vpack.c.b16 %v217, %v216
  %v254 = vpack.c.b16 %v219, %v218
  %v255 = vpack.c.b16 %v221, %v220
  %v256 = vpack.c.b16 %v223, %v222
  %v257 = vpack.c.b16 %v225, %v224
  %v270 = vunpack.c.l.b16 %v79
  %v271 = vunpack.c.l.b16 %v80
  %v272 = vunpack.c.l.b16 %v81
  %v273 = vunpack.c.l.b16 %v82
  %v274 = vunpack.c.l.b16 %v83
  %v275 = vunpack.c.l.b16 %v84
  %v276 = vunpack.c.l.b16 %v85
  %v277 = vunpack.c.l.b16 %v86
  %v278 = vunpack.c.l.b16 %v87
  %v279 = vunpack.c.l.b16 %v88
  %v280 = vunpack.c.l.b16 %v89
  %v281 = vunpack.c.l.b16 %v90
  %v282 = vpack.c.b16 %v271, %v270
  %v283 = vpack.c.b16 %v273, %v272
  %v284 = vpack.c.b16 %v275, %v274
  %v285 = vpack.c.b16 %v277, %v276
  %v286 = vpack.c.b16 %v279, %v278
  %v287 = vpack.c.b16 %v281, %v280
  %vm294 = vcmask 785408
  %v296 = vsel %vm294, %v226, 0
  %v299 = vsel %vm294, %v227, 0
  %v302 = vsel %vm294, %v228, 0
  %v305 = vsel %vm294, %v229, 0
  %v308 = vsel %vm294, %v230, 0
  %v311 = vsel %vm294, %v231, 0
  %v314 = vsel %vm294, %v232, 0
  %v317 = vsel %vm294, %v233, 0
  %v320 = vsel %vm294, %v234, 0
  %v323 = vsel %vm294, %v235, 0
  %v326 = vsel %vm294, %v236, 0
  %v329 = vsel %vm294, %v237, 0
  %v332 = vsel %vm294, %v238, 0
  %v335 = vsel %vm294, %v239, 0
  %v338 = vsel %vm294, %v240, 0
  %v341 = vsel %vm294, %v241, 0
  %v344 = vsel %vm294, %v242, 0
  %v347 = vsel %vm294, %v243, 0
  %v350 = vsel %vm294, %v244, 0
  %v353 = vsel %vm294, %v245, 0
  %v356 = vsel %vm294, %v246, 0
  %v359 = vsel %vm294, %v247, 0
  %v362 = vsel %vm294, %v248, 0
  %v365 = vsel %vm294, %v249, 0
  %v368 = vsel %vm294, %v250, 0
  %v371 = vsel %vm294, %v251, 0
  %v374 = vsel %vm294, %v252, 0
  %v377 = vsel %vm294, %v253, 0
  %v380 = vsel %vm294, %v254, 0
  %v383 = vsel %vm294, %v255, 0
  %v386 = vsel %vm294, %v256, 0
  %v389 = vsel %vm294, %v257, 0
  %391 = vmatprep.subr.bf16.mxu0 0
  %392 = vmatpush1.bf16.msra.mxu0 0
  %393 = vmatprep.subr.bf16.mxu0 0
  %394 = vmatpush1.bf16.msra.mxu0 0
  %395 = vmatprep.subr.bf16.mxu0 0
  %396 = vmatpush1.bf16.msra.mxu0 %v287
  %397 = vmatprep.subr.bf16.mxu0 0
  %398 = vmatpush1.bf16.msra.mxu0 %v286
  %399 = vmatprep.subr.bf16.mxu0 0
  %400 = vmatpush1.bf16.msra.mxu0 %v285
  %401 = vmatprep.subr.bf16.mxu0 0
  %402 = vmatpush1.bf16.msra.mxu0 %v284
  %403 = vmatprep.subr.bf16.mxu0 0
  %404 = vmatpush1.bf16.msra.mxu0 %v283
  %405 = vmatprep.subr.bf16.mxu0 0
  %406 = vmatpush1.bf16.msra.mxu0 %v282
  %407 = vmatprep.subr.bf16.mxu0 0
  %408 = vmatpush2.bf16.msra.mxu0 0
  %409 = vmatprep.subr.bf16.mxu0 0
  %410 = vmatpush2.bf16.msra.mxu0 0
  %411 = vmatprep.subr.bf16.mxu0 0
  %412 = vmatpush2.bf16.msra.mxu0 0
  %413 = vmatprep.subr.bf16.mxu0 0
  %414 = vmatpush2.bf16.msra.mxu0 0
  %415 = vmatprep.subr.bf16.mxu0 0
  %416 = vmatpush2.bf16.msra.mxu0 0
  %417 = vmatprep.subr.bf16.mxu0 0
  %418 = vmatpush2.bf16.msra.mxu0 0
  %419 = vmatprep.subr.bf16.mxu0 0
  %420 = vmatpush2.bf16.msra.mxu0 0
  %421 = vmatprep.subr.bf16.mxu0 0
  %422 = vmatpush2.bf16.msra.mxu0 0
  %423 = vmatprep.mubr.bf16.mxu0 0
  %424 = vmatmul.mubr.bf16.gmra.mxu0 %v296
  %v425 = vpop.f32.mrf.mxu0
  %v426 = vadd.f32 %v96, %v425
  %v427 = vpop.f32.mrf.mxu0
  %v428 = vpop.f32.mrf.mxu0
  %v429 = vadd.f32 %v96, %v428
  %v430 = vpop.f32.mrf.mxu0
  %431 = vmatprep.mubr.bf16.mxu0 0
  %432 = vmatmul.mubr.bf16.gmra.mxu0 %v299
  %v433 = vpop.f32.mrf.mxu0
  %v434 = vadd.f32 %v96, %v433
  %v435 = vpop.f32.mrf.mxu0
  %v436 = vpop.f32.mrf.mxu0
  %v437 = vadd.f32 %v96, %v436
  %v438 = vpop.f32.mrf.mxu0
  %439 = vmatprep.mubr.bf16.mxu0 0
  %440 = vmatmul.mubr.bf16.gmra.mxu0 %v302
  %v441 = vpop.f32.mrf.mxu0
  %v442 = vadd.f32 %v96, %v441
  %v443 = vpop.f32.mrf.mxu0
  %v444 = vpop.f32.mrf.mxu0
  %v445 = vadd.f32 %v96, %v444
  %v446 = vpop.f32.mrf.mxu0
  %447 = vmatprep.mubr.bf16.mxu0 0
  %448 = vmatmul.mubr.bf16.gmra.mxu0 %v305
  %v449 = vpop.f32.mrf.mxu0
  %v450 = vadd.f32 %v96, %v449
  %v451 = vpop.f32.mrf.mxu0
  %v452 = vpop.f32.mrf.mxu0
  %v453 = vadd.f32 %v96, %v452
  %v454 = vpop.f32.mrf.mxu0
  %455 = vmatprep.mubr.bf16.mxu0 0
  %456 = vmatmul.mubr.bf16.gmra.mxu0 %v308
  %v457 = vpop.f32.mrf.mxu0
  %v458 = vadd.f32 %v96, %v457
  %v459 = vpop.f32.mrf.mxu0
  %v460 = vpop.f32.mrf.mxu0
  %v461 = vadd.f32 %v96, %v460
  %v462 = vpop.f32.mrf.mxu0
  %463 = vmatprep.mubr.bf16.mxu0 0
  %464 = vmatmul.mubr.bf16.gmra.mxu0 %v311
  %v465 = vpop.f32.mrf.mxu0
  %v466 = vadd.f32 %v96, %v465
  %v467 = vpop.f32.mrf.mxu0
  %v468 = vpop.f32.mrf.mxu0
  %v469 = vadd.f32 %v96, %v468
  %v470 = vpop.f32.mrf.mxu0
  %471 = vmatprep.mubr.bf16.mxu0 0
  %472 = vmatmul.mubr.bf16.gmra.mxu0 %v314
  %v473 = vpop.f32.mrf.mxu0
  %v474 = vadd.f32 %v96, %v473
  %v475 = vpop.f32.mrf.mxu0
  %v476 = vpop.f32.mrf.mxu0
  %v477 = vadd.f32 %v96, %v476
  %v478 = vpop.f32.mrf.mxu0
  %479 = vmatprep.mubr.bf16.mxu0 0
  %480 = vmatmul.mubr.bf16.gmra.mxu0 %v317
  %v481 = vpop.f32.mrf.mxu0
  %v482 = vadd.f32 %v96, %v481
  %v483 = vpop.f32.mrf.mxu0
  %v484 = vpop.f32.mrf.mxu0
  %v485 = vadd.f32 %v96, %v484
  %v486 = vpop.f32.mrf.mxu0
  %487 = vmatprep.mubr.bf16.mxu0 0
  %488 = vmatmul.mubr.bf16.gmra.mxu0 %v320
  %v489 = vpop.f32.mrf.mxu0
  %v490 = vadd.f32 %v96, %v489
  %v491 = vpop.f32.mrf.mxu0
  %v492 = vpop.f32.mrf.mxu0
  %v493 = vadd.f32 %v96, %v492
  %v494 = vpop.f32.mrf.mxu0
  %495 = vmatprep.mubr.bf16.mxu0 0
  %496 = vmatmul.mubr.bf16.gmra.mxu0 %v323
  %v497 = vpop.f32.mrf.mxu0
  %v498 = vadd.f32 %v96, %v497
  %v499 = vpop.f32.mrf.mxu0
  %v500 = vpop.f32.mrf.mxu0
  %v501 = vadd.f32 %v96, %v500
  %v502 = vpop.f32.mrf.mxu0
  %503 = vmatprep.mubr.bf16.mxu0 0
  %504 = vmatmul.mubr.bf16.gmra.mxu0 %v326
  %v505 = vpop.f32.mrf.mxu0
  %v506 = vadd.f32 %v96, %v505
  %v507 = vpop.f32.mrf.mxu0
  %v508 = vpop.f32.mrf.mxu0
  %v509 = vadd.f32 %v96, %v508
  %v510 = vpop.f32.mrf.mxu0
  %511 = vmatprep.mubr.bf16.mxu0 0
  %512 = vmatmul.mubr.bf16.gmra.mxu0 %v329
  %v513 = vpop.f32.mrf.mxu0
  %v514 = vadd.f32 %v96, %v513
  %v515 = vpop.f32.mrf.mxu0
  %v516 = vpop.f32.mrf.mxu0
  %v517 = vadd.f32 %v96, %v516
  %v518 = vpop.f32.mrf.mxu0
  %519 = vmatprep.mubr.bf16.mxu0 0
  %520 = vmatmul.mubr.bf16.gmra.mxu0 %v332
  %v521 = vpop.f32.mrf.mxu0
  %v522 = vadd.f32 %v96, %v521
  %v523 = vpop.f32.mrf.mxu0
  %v524 = vpop.f32.mrf.mxu0
  %v525 = vadd.f32 %v96, %v524
  %v526 = vpop.f32.mrf.mxu0
  %527 = vmatprep.mubr.bf16.mxu0 0
  %528 = vmatmul.mubr.bf16.gmra.mxu0 %v335
  %v529 = vpop.f32.mrf.mxu0
  %v530 = vadd.f32 %v96, %v529
  %v531 = vpop.f32.mrf.mxu0
  %v532 = vpop.f32.mrf.mxu0
  %v533 = vadd.f32 %v96, %v532
  %v534 = vpop.f32.mrf.mxu0
  %535 = vmatprep.mubr.bf16.mxu0 0
  %536 = vmatmul.mubr.bf16.gmra.mxu0 %v338
  %v537 = vpop.f32.mrf.mxu0
  %v538 = vadd.f32 %v96, %v537
  %v539 = vpop.f32.mrf.mxu0
  %v540 = vpop.f32.mrf.mxu0
  %v541 = vadd.f32 %v96, %v540
  %v542 = vpop.f32.mrf.mxu0
  %543 = vmatprep.mubr.bf16.mxu0 0
  %544 = vmatmul.mubr.bf16.gmra.mxu0 %v341
  %v545 = vpop.f32.mrf.mxu0
  %v546 = vadd.f32 %v96, %v545
  %v547 = vpop.f32.mrf.mxu0
  %v548 = vpop.f32.mrf.mxu0
  %v549 = vadd.f32 %v96, %v548
  %v550 = vpop.f32.mrf.mxu0
  %551 = vmatprep.mubr.bf16.mxu0 0
  %552 = vmatmul.mubr.bf16.gmra.mxu0 %v344
  %v553 = vpop.f32.mrf.mxu0
  %v554 = vadd.f32 %v96, %v553
  %v555 = vpop.f32.mrf.mxu0
  %v556 = vpop.f32.mrf.mxu0
  %v557 = vadd.f32 %v96, %v556
  %v558 = vpop.f32.mrf.mxu0
  %559 = vmatprep.mubr.bf16.mxu0 0
  %560 = vmatmul.mubr.bf16.gmra.mxu0 %v347
  %v561 = vpop.f32.mrf.mxu0
  %v562 = vadd.f32 %v96, %v561
  %v563 = vpop.f32.mrf.mxu0
  %v564 = vpop.f32.mrf.mxu0
  %v565 = vadd.f32 %v96, %v564
  %v566 = vpop.f32.mrf.mxu0
  %567 = vmatprep.mubr.bf16.mxu0 0
  %568 = vmatmul.mubr.bf16.gmra.mxu0 %v350
  %v569 = vpop.f32.mrf.mxu0
  %v570 = vadd.f32 %v96, %v569
  %v571 = vpop.f32.mrf.mxu0
  %v572 = vpop.f32.mrf.mxu0
  %v573 = vadd.f32 %v96, %v572
  %v574 = vpop.f32.mrf.mxu0
  %575 = vmatprep.mubr.bf16.mxu0 0
  %576 = vmatmul.mubr.bf16.gmra.mxu0 %v353
  %v577 = vpop.f32.mrf.mxu0
  %v578 = vadd.f32 %v96, %v577
  %v579 = vpop.f32.mrf.mxu0
  %v580 = vpop.f32.mrf.mxu0
  %v581 = vadd.f32 %v96, %v580
  %v582 = vpop.f32.mrf.mxu0
  %583 = vmatprep.mubr.bf16.mxu0 0
  %584 = vmatmul.mubr.bf16.gmra.mxu0 %v356
  %v585 = vpop.f32.mrf.mxu0
  %v586 = vadd.f32 %v96, %v585
  %v587 = vpop.f32.mrf.mxu0
  %v588 = vpop.f32.mrf.mxu0
  %v589 = vadd.f32 %v96, %v588
  %v590 = vpop.f32.mrf.mxu0
  %591 = vmatprep.mubr.bf16.mxu0 0
  %592 = vmatmul.mubr.bf16.gmra.mxu0 %v359
  %v593 = vpop.f32.mrf.mxu0
  %v594 = vadd.f32 %v96, %v593
  %v595 = vpop.f32.mrf.mxu0
  %v596 = vpop.f32.mrf.mxu0
  %v597 = vadd.f32 %v96, %v596
  %v598 = vpop.f32.mrf.mxu0
  %599 = vmatprep.mubr.bf16.mxu0 0
  %600 = vmatmul.mubr.bf16.gmra.mxu0 %v362
  %v601 = vpop.f32.mrf.mxu0
  %v602 = vadd.f32 %v96, %v601
  %v603 = vpop.f32.mrf.mxu0
  %v604 = vpop.f32.mrf.mxu0
  %v605 = vadd.f32 %v96, %v604
  %v606 = vpop.f32.mrf.mxu0
  %607 = vmatprep.mubr.bf16.mxu0 0
  %608 = vmatmul.mubr.bf16.gmra.mxu0 %v365
  %v609 = vpop.f32.mrf.mxu0
  %v610 = vadd.f32 %v96, %v609
  %v611 = vpop.f32.mrf.mxu0
  %v612 = vpop.f32.mrf.mxu0
  %v613 = vadd.f32 %v96, %v612
  %v614 = vpop.f32.mrf.mxu0
  %615 = vmatprep.mubr.bf16.mxu0 0
  %616 = vmatmul.mubr.bf16.gmra.mxu0 %v368
  %v617 = vpop.f32.mrf.mxu0
  %v618 = vadd.f32 %v96, %v617
  %v619 = vpop.f32.mrf.mxu0
  %v620 = vpop.f32.mrf.mxu0
  %v621 = vadd.f32 %v96, %v620
  %v622 = vpop.f32.mrf.mxu0
  %623 = vmatprep.mubr.bf16.mxu0 0
  %624 = vmatmul.mubr.bf16.gmra.mxu0 %v371
  %v625 = vpop.f32.mrf.mxu0
  %v626 = vadd.f32 %v96, %v625
  %v627 = vpop.f32.mrf.mxu0
  %v628 = vpop.f32.mrf.mxu0
  %v629 = vadd.f32 %v96, %v628
  %v630 = vpop.f32.mrf.mxu0
  %631 = vmatprep.mubr.bf16.mxu0 0
  %632 = vmatmul.mubr.bf16.gmra.mxu0 %v374
  %v633 = vpop.f32.mrf.mxu0
  %v634 = vadd.f32 %v96, %v633
  %v635 = vpop.f32.mrf.mxu0
  %v636 = vpop.f32.mrf.mxu0
  %v637 = vadd.f32 %v96, %v636
  %v638 = vpop.f32.mrf.mxu0
  %639 = vmatprep.mubr.bf16.mxu0 0
  %640 = vmatmul.mubr.bf16.gmra.mxu0 %v377
  %v641 = vpop.f32.mrf.mxu0
  %v642 = vadd.f32 %v96, %v641
  %v643 = vpop.f32.mrf.mxu0
  %v644 = vpop.f32.mrf.mxu0
  %v645 = vadd.f32 %v96, %v644
  %v646 = vpop.f32.mrf.mxu0
  %647 = vmatprep.mubr.bf16.mxu0 0
  %648 = vmatmul.mubr.bf16.gmra.mxu0 %v380
  %v649 = vpop.f32.mrf.mxu0
  %v650 = vadd.f32 %v96, %v649
  %v651 = vpop.f32.mrf.mxu0
  %v652 = vpop.f32.mrf.mxu0
  %v653 = vadd.f32 %v96, %v652
  %v654 = vpop.f32.mrf.mxu0
  %655 = vmatprep.mubr.bf16.mxu0 0
  %656 = vmatmul.mubr.bf16.gmra.mxu0 %v383
  %v657 = vpop.f32.mrf.mxu0
  %v658 = vadd.f32 %v96, %v657
  %v659 = vpop.f32.mrf.mxu0
  %v660 = vpop.f32.mrf.mxu0
  %v661 = vadd.f32 %v96, %v660
  %v662 = vpop.f32.mrf.mxu0
  %663 = vmatprep.mubr.bf16.mxu0 0
  %664 = vmatmul.mubr.bf16.gmra.mxu0 %v386
  %v665 = vpop.f32.mrf.mxu0
  %v666 = vadd.f32 %v96, %v665
  %v667 = vpop.f32.mrf.mxu0
  %v668 = vpop.f32.mrf.mxu0
  %v669 = vadd.f32 %v96, %v668
  %v670 = vpop.f32.mrf.mxu0
  %671 = vmatprep.mubr.bf16.mxu0 0
  %672 = vmatmul.mubr.bf16.gmra.mxu0 %v389
  %v673 = vpop.f32.mrf.mxu0
  %v674 = vadd.f32 %v96, %v673
  %v675 = vpop.f32.mrf.mxu0
  %v676 = vpop.f32.mrf.mxu0
  %v677 = vadd.f32 %v96, %v676
  %v678 = vpop.f32.mrf.mxu0
  %679 = vdwg.mxu0
  %v680 = vmax.f32 %v426, 0.0
  %v681 = vmax.f32 %v429, 0.0
  %v682 = vmax.f32 %v434, 0.0
  %v683 = vmax.f32 %v437, 0.0
  %v684 = vmax.f32 %v442, 0.0
  %v685 = vmax.f32 %v445, 0.0
  %v686 = vmax.f32 %v450, 0.0
  %v687 = vmax.f32 %v453, 0.0
  %v688 = vmax.f32 %v458, 0.0
  %v689 = vmax.f32 %v461, 0.0
  %v690 = vmax.f32 %v466, 0.0
  %v691 = vmax.f32 %v469, 0.0
  %v692 = vmax.f32 %v474, 0.0
  %v693 = vmax.f32 %v477, 0.0
  %v694 = vmax.f32 %v482, 0.0
  %v695 = vmax.f32 %v485, 0.0
  %v696 = vmax.f32 %v490, 0.0
  %v697 = vmax.f32 %v493, 0.0
  %v698 = vmax.f32 %v498, 0.0
  %v699 = vmax.f32 %v501, 0.0
  %v700 = vmax.f32 %v506, 0.0
  %v701 = vmax.f32 %v509, 0.0
  %v702 = vmax.f32 %v514, 0.0
  %v703 = vmax.f32 %v517, 0.0
  %v704 = vmax.f32 %v522, 0.0
  %v705 = vmax.f32 %v525, 0.0
  %v706 = vmax.f32 %v530, 0.0
  %v707 = vmax.f32 %v533, 0.0
  %v708 = vmax.f32 %v538, 0.0
  %v709 = vmax.f32 %v541, 0.0
  %v710 = vmax.f32 %v546, 0.0
  %v711 = vmax.f32 %v549, 0.0
  %v712 = vmax.f32 %v554, 0.0
  %v713 = vmax.f32 %v557, 0.0
  %v714 = vmax.f32 %v562, 0.0
  %v715 = vmax.f32 %v565, 0.0
  %v716 = vmax.f32 %v570, 0.0
  %v717 = vmax.f32 %v573, 0.0
  %v718 = vmax.f32 %v578, 0.0
  %v719 = vmax.f32 %v581, 0.0
  %v720 = vmax.f32 %v586, 0.0
  %v721 = vmax.f32 %v589, 0.0
  %v722 = vmax.f32 %v594, 0.0
  %v723 = vmax.f32 %v597, 0.0
  %v724 = vmax.f32 %v602, 0.0
  %v725 = vmax.f32 %v605, 0.0
  %v726 = vmax.f32 %v610, 0.0
  %v727 = vmax.f32 %v613, 0.0
  %v728 = vmax.f32 %v618, 0.0
  %v729 = vmax.f32 %v621, 0.0
  %v730 = vmax.f32 %v626, 0.0
  %v731 = vmax.f32 %v629, 0.0
  %v732 = vmax.f32 %v634, 0.0
  %v733 = vmax.f32 %v637, 0.0
  %v734 = vmax.f32 %v642, 0.0
  %v735 = vmax.f32 %v645, 0.0
  %v736 = vmax.f32 %v650, 0.0
  %v737 = vmax.f32 %v653, 0.0
  %v738 = vmax.f32 %v658, 0.0
  %v739 = vmax.f32 %v661, 0.0
  %v740 = vmax.f32 %v666, 0.0
  %v741 = vmax.f32 %v669, 0.0
  %v742 = vmax.f32 %v674, 0.0
  %v743 = vmax.f32 %v677, 0.0
  %v744 = vpack.c.bf16 %v681, %v680
  %v745 = vpack.c.bf16 %v683, %v682
  %v746 = vpack.c.bf16 %v685, %v684
  %v747 = vpack.c.bf16 %v687, %v686
  %v748 = vpack.c.bf16 %v689, %v688
  %v749 = vpack.c.bf16 %v691, %v690
  %v750 = vpack.c.bf16 %v693, %v692
  %v751 = vpack.c.bf16 %v695, %v694
  %v752 = vpack.c.bf16 %v697, %v696
  %v753 = vpack.c.bf16 %v699, %v698
  %v754 = vpack.c.bf16 %v701, %v700
  %v755 = vpack.c.bf16 %v703, %v702
  %v756 = vpack.c.bf16 %v705, %v704
  %v757 = vpack.c.bf16 %v707, %v706
  %v758 = vpack.c.bf16 %v709, %v708
  %v759 = vpack.c.bf16 %v711, %v710
  %v760 = vpack.c.bf16 %v713, %v712
  %v761 = vpack.c.bf16 %v715, %v714
  %v762 = vpack.c.bf16 %v717, %v716
  %v763 = vpack.c.bf16 %v719, %v718
  %v764 = vpack.c.bf16 %v721, %v720
  %v765 = vpack.c.bf16 %v723, %v722
  %v766 = vpack.c.bf16 %v725, %v724
  %v767 = vpack.c.bf16 %v727, %v726
  %v768 = vpack.c.bf16 %v729, %v728
  %v769 = vpack.c.bf16 %v731, %v730
  %v770 = vpack.c.bf16 %v733, %v732
  %v771 = vpack.c.bf16 %v735, %v734
  %v772 = vpack.c.bf16 %v737, %v736
  %v773 = vpack.c.bf16 %v739, %v738
  %v774 = vpack.c.bf16 %v741, %v740
  %v775 = vpack.c.bf16 %v743, %v742
  %v808 = vunpack.c.l.b16 %v744
  %v809 = vunpack.c.h.b16 %v744
  %v810 = vunpack.c.l.b16 %v745
  %v811 = vunpack.c.h.b16 %v745
  %v812 = vunpack.c.l.b16 %v746
  %v813 = vunpack.c.h.b16 %v746
  %v814 = vunpack.c.l.b16 %v747
  %v815 = vunpack.c.h.b16 %v747
  %v816 = vunpack.c.l.b16 %v748
  %v817 = vunpack.c.h.b16 %v748
  %v818 = vunpack.c.l.b16 %v749
  %v819 = vunpack.c.h.b16 %v749
  %v820 = vunpack.c.l.b16 %v750
  %v821 = vunpack.c.h.b16 %v750
  %v822 = vunpack.c.l.b16 %v751
  %v823 = vunpack.c.h.b16 %v751
  %v824 = vunpack.c.l.b16 %v752
  %v825 = vunpack.c.h.b16 %v752
  %v826 = vunpack.c.l.b16 %v753
  %v827 = vunpack.c.h.b16 %v753
  %v828 = vunpack.c.l.b16 %v754
  %v829 = vunpack.c.h.b16 %v754
  %v830 = vunpack.c.l.b16 %v755
  %v831 = vunpack.c.h.b16 %v755
  %v832 = vunpack.c.l.b16 %v756
  %v833 = vunpack.c.h.b16 %v756
  %v834 = vunpack.c.l.b16 %v757
  %v835 = vunpack.c.h.b16 %v757
  %v836 = vunpack.c.l.b16 %v758
  %v837 = vunpack.c.h.b16 %v758
  %v838 = vunpack.c.l.b16 %v759
  %v839 = vunpack.c.h.b16 %v759
  %v840 = vunpack.c.l.b16 %v760
  %v841 = vunpack.c.h.b16 %v760
  %v842 = vunpack.c.l.b16 %v761
  %v843 = vunpack.c.h.b16 %v761
  %v844 = vunpack.c.l.b16 %v762
  %v845 = vunpack.c.h.b16 %v762
  %v846 = vunpack.c.l.b16 %v763
  %v847 = vunpack.c.h.b16 %v763
  %v848 = vunpack.c.l.b16 %v764
  %v849 = vunpack.c.h.b16 %v764
  %v850 = vunpack.c.l.b16 %v765
  %v851 = vunpack.c.h.b16 %v765
  %v852 = vunpack.c.l.b16 %v766
  %v853 = vunpack.c.h.b16 %v766
  %v854 = vunpack.c.l.b16 %v767
  %v855 = vunpack.c.h.b16 %v767
  %v856 = vunpack.c.l.b16 %v768
  %v857 = vunpack.c.h.b16 %v768
  %v858 = vunpack.c.l.b16 %v769
  %v859 = vunpack.c.h.b16 %v769
  %v860 = vunpack.c.l.b16 %v770
  %v861 = vunpack.c.h.b16 %v770
  %v862 = vunpack.c.l.b16 %v771
  %v863 = vunpack.c.h.b16 %v771
  %v864 = vunpack.c.l.b16 %v772
  %v865 = vunpack.c.h.b16 %v772
  %v866 = vunpack.c.l.b16 %v773
  %v867 = vunpack.c.h.b16 %v773
  %v868 = vunpack.c.l.b16 %v774
  %v869 = vunpack.c.h.b16 %v774
  %v870 = vunpack.c.l.b16 %v775
  %v871 = vunpack.c.h.b16 %v775
  %v872 = vpack.c.b16 %v808, %v808
  %v873 = vpack.c.b16 %v809, %v809
  %v874 = vpack.c.b16 %v810, %v810
  %v875 = vpack.c.b16 %v811, %v811
  %v876 = vpack.c.b16 %v812, %v812
  %v877 = vpack.c.b16 %v813, %v813
  %v878 = vpack.c.b16 %v814, %v814
  %v879 = vpack.c.b16 %v815, %v815
  %v880 = vpack.c.b16 %v816, %v816
  %v881 = vpack.c.b16 %v817, %v817
  %v882 = vpack.c.b16 %v818, %v818
  %v883 = vpack.c.b16 %v819, %v819
  %v884 = vpack.c.b16 %v820, %v820
  %v885 = vpack.c.b16 %v821, %v821
  %v886 = vpack.c.b16 %v822, %v822
  %v887 = vpack.c.b16 %v823, %v823
  %v888 = vpack.c.b16 %v824, %v824
  %v889 = vpack.c.b16 %v825, %v825
  %v890 = vpack.c.b16 %v826, %v826
  %v891 = vpack.c.b16 %v827, %v827
  %v892 = vpack.c.b16 %v828, %v828
  %v893 = vpack.c.b16 %v829, %v829
  %v894 = vpack.c.b16 %v830, %v830
  %v895 = vpack.c.b16 %v831, %v831
  %v896 = vpack.c.b16 %v832, %v832
  %v897 = vpack.c.b16 %v833, %v833
  %v898 = vpack.c.b16 %v834, %v834
  %v899 = vpack.c.b16 %v835, %v835
  %v900 = vpack.c.b16 %v836, %v836
  %v901 = vpack.c.b16 %v837, %v837
  %v902 = vpack.c.b16 %v838, %v838
  %v903 = vpack.c.b16 %v839, %v839
  %v904 = vpack.c.b16 %v840, %v840
  %v905 = vpack.c.b16 %v841, %v841
  %v906 = vpack.c.b16 %v842, %v842
  %v907 = vpack.c.b16 %v843, %v843
  %v908 = vpack.c.b16 %v844, %v844
  %v909 = vpack.c.b16 %v845, %v845
  %v910 = vpack.c.b16 %v846, %v846
  %v911 = vpack.c.b16 %v847, %v847
  %v912 = vpack.c.b16 %v848, %v848
  %v913 = vpack.c.b16 %v849, %v849
  %v914 = vpack.c.b16 %v850, %v850
  %v915 = vpack.c.b16 %v851, %v851
  %v916 = vpack.c.b16 %v852, %v852
  %v917 = vpack.c.b16 %v853, %v853
  %v918 = vpack.c.b16 %v854, %v854
  %v919 = vpack.c.b16 %v855, %v855
  %v920 = vpack.c.b16 %v856, %v856
  %v921 = vpack.c.b16 %v857, %v857
  %v922 = vpack.c.b16 %v858, %v858
  %v923 = vpack.c.b16 %v859, %v859
  %v924 = vpack.c.b16 %v860, %v860
  %v925 = vpack.c.b16 %v861, %v861
  %v926 = vpack.c.b16 %v862, %v862
  %v927 = vpack.c.b16 %v863, %v863
  %v928 = vpack.c.b16 %v864, %v864
  %v929 = vpack.c.b16 %v865, %v865
  %v930 = vpack.c.b16 %v866, %v866
  %v931 = vpack.c.b16 %v867, %v867
  %v932 = vpack.c.b16 %v868, %v868
  %v933 = vpack.c.b16 %v869, %v869
  %v934 = vpack.c.b16 %v870, %v870
  %v935 = vpack.c.b16 %v871, %v871
  %vm1000 = vcmask 60416
  %1001 = vst.msk [vmem:[%s3] sm:$0xf] %vm1000, %v872
  %1002 = vst.msk [vmem:[%s3 + $0x4] sm:$0xf] %vm1000, %v873
  %1003 = vst.msk [vmem:[%s3 + $0x8] sm:$0xf] %vm1000, %v874
  %1004 = vst.msk [vmem:[%s3 + $0xc] sm:$0xf] %vm1000, %v875
  %1005 = vst.msk [vmem:[%s3 + $0x10] sm:$0xf] %vm1000, %v876
  %1006 = vst.msk [vmem:[%s3 + $0x14] sm:$0xf] %vm1000, %v877
  %1007 = vst.msk [vmem:[%s3 + $0x18] sm:$0xf] %vm1000, %v878
  %1008 = vst.msk [vmem:[%s3 + $0x1c] sm:$0xf] %vm1000, %v879
  %1009 = vst.msk [vmem:[%s3 + $0x20] sm:$0xf] %vm1000, %v880
  %1010 = vst.msk [vmem:[%s3 + $0x24] sm:$0xf] %vm1000, %v881
  %1011 = vst.msk [vmem:[%s3 + $0x28] sm:$0xf] %vm1000, %v882
  %1012 = vst.msk [vmem:[%s3 + $0x2c] sm:$0xf] %vm1000, %v883
  %1013 = vst.msk [vmem:[%s3 + $0x30] sm:$0xf] %vm1000, %v884
  %1014 = vst.msk [vmem:[%s3 + $0x34] sm:$0xf] %vm1000, %v885
  %1015 = vst.msk [vmem:[%s3 + $0x38] sm:$0xf] %vm1000, %v886
  %1016 = vst.msk [vmem:[%s3 + $0x3c] sm:$0xf] %vm1000, %v887
  %1017 = vst.msk [vmem:[%s3 + $0x40] sm:$0xf] %vm1000, %v888
  %1018 = vst.msk [vmem:[%s3 + $0x44] sm:$0xf] %vm1000, %v889
  %1019 = vst.msk [vmem:[%s3 + $0x48] sm:$0xf] %vm1000, %v890
  %1020 = vst.msk [vmem:[%s3 + $0x4c] sm:$0xf] %vm1000, %v891
  %1021 = vst.msk [vmem:[%s3 + $0x50] sm:$0xf] %vm1000, %v892
  %1022 = vst.msk [vmem:[%s3 + $0x54] sm:$0xf] %vm1000, %v893
  %1023 = vst.msk [vmem:[%s3 + $0x58] sm:$0xf] %vm1000, %v894
  %1024 = vst.msk [vmem:[%s3 + $0x5c] sm:$0xf] %vm1000, %v895
  %1025 = vst.msk [vmem:[%s3 + $0x60] sm:$0xf] %vm1000, %v896
  %1026 = vst.msk [vmem:[%s3 + $0x64] sm:$0xf] %vm1000, %v897
  %1027 = vst.msk [vmem:[%s3 + $0x68] sm:$0xf] %vm1000, %v898
  %1028 = vst.msk [vmem:[%s3 + $0x6c] sm:$0xf] %vm1000, %v899
  %1029 = vst.msk [vmem:[%s3 + $0x70] sm:$0xf] %vm1000, %v900
  %1030 = vst.msk [vmem:[%s3 + $0x74] sm:$0xf] %vm1000, %v901
  %1031 = vst.msk [vmem:[%s3 + $0x78] sm:$0xf] %vm1000, %v902
  %1032 = vst.msk [vmem:[%s3 + $0x7c] sm:$0xf] %vm1000, %v903
  %1033 = vst.msk [vmem:[%s3 + $0x80] sm:$0xf] %vm1000, %v904
  %1034 = vst.msk [vmem:[%s3 + $0x84] sm:$0xf] %vm1000, %v905
  %1035 = vst.msk [vmem:[%s3 + $0x88] sm:$0xf] %vm1000, %v906
  %1036 = vst.msk [vmem:[%s3 + $0x8c] sm:$0xf] %vm1000, %v907
  %1037 = vst.msk [vmem:[%s3 + $0x90] sm:$0xf] %vm1000, %v908
  %1038 = vst.msk [vmem:[%s3 + $0x94] sm:$0xf] %vm1000, %v909
  %1039 = vst.msk [vmem:[%s3 + $0x98] sm:$0xf] %vm1000, %v910
  %1040 = vst.msk [vmem:[%s3 + $0x9c] sm:$0xf] %vm1000, %v911
  %1041 = vst.msk [vmem:[%s3 + $0xa0] sm:$0xf] %vm1000, %v912
  %1042 = vst.msk [vmem:[%s3 + $0xa4] sm:$0xf] %vm1000, %v913
  %1043 = vst.msk [vmem:[%s3 + $0xa8] sm:$0xf] %vm1000, %v914
  %1044 = vst.msk [vmem:[%s3 + $0xac] sm:$0xf] %vm1000, %v915
  %1045 = vst.msk [vmem:[%s3 + $0xb0] sm:$0xf] %vm1000, %v916
  %1046 = vst.msk [vmem:[%s3 + $0xb4] sm:$0xf] %vm1000, %v917
  %1047 = vst.msk [vmem:[%s3 + $0xb8] sm:$0xf] %vm1000, %v918
  %1048 = vst.msk [vmem:[%s3 + $0xbc] sm:$0xf] %vm1000, %v919
  %1049 = vst.msk [vmem:[%s3 + $0xc0] sm:$0xf] %vm1000, %v920
  %1050 = vst.msk [vmem:[%s3 + $0xc4] sm:$0xf] %vm1000, %v921
  %1051 = vst.msk [vmem:[%s3 + $0xc8] sm:$0xf] %vm1000, %v922
  %1052 = vst.msk [vmem:[%s3 + $0xcc] sm:$0xf] %vm1000, %v923
  %1053 = vst.msk [vmem:[%s3 + $0xd0] sm:$0xf] %vm1000, %v924
  %1054 = vst.msk [vmem:[%s3 + $0xd4] sm:$0xf] %vm1000, %v925
  %1055 = vst.msk [vmem:[%s3 + $0xd8] sm:$0xf] %vm1000, %v926
  %1056 = vst.msk [vmem:[%s3 + $0xdc] sm:$0xf] %vm1000, %v927
  %1057 = vst.msk [vmem:[%s3 + $0xe0] sm:$0xf] %vm1000, %v928
  %1058 = vst.msk [vmem:[%s3 + $0xe4] sm:$0xf] %vm1000, %v929
  %1059 = vst.msk [vmem:[%s3 + $0xe8] sm:$0xf] %vm1000, %v930
  %1060 = vst.msk [vmem:[%s3 + $0xec] sm:$0xf] %vm1000, %v931
  %1061 = vst.msk [vmem:[%s3 + $0xf0] sm:$0xf] %vm1000, %v932
  %1062 = vst.msk [vmem:[%s3 + $0xf4] sm:$0xf] %vm1000, %v933
  %1063 = vst.msk [vmem:[%s3 + $0xf8] sm:$0xf] %vm1000, %v934
  %1064 = vst.msk [vmem:[%s3 + $0xfc] sm:$0xf] %vm1000, %v935
  // Predicated region
  $region14: #{tpu_custom_call.1} parent=0 // pred_check
    _
  $region15: #{tpu_custom_call.1} parent=0 // pred_check_branch
    %1066 = sbr.rel (0) target = $region17
  $region16: #{tpu_custom_call.1} parent=0 // pred_region
    _
  $region17: #{tpu_custom_call.1} parent=0 // pred_fallthru
    _
  // Predicated region
  $region18: #{tpu_custom_call.1} parent=0 // pred_check
    _
  $region19: #{tpu_custom_call.1} parent=0 // pred_check_branch
    %1068 = sbr.rel (0) target = $region21
  $region20: #{tpu_custom_call.1} parent=0 // pred_region
    _
  $region21: #{tpu_custom_call.1} parent=0 // pred_fallthru
    _

</llo_original>
